<compile_context>
chip_gen: v7x
topology: tpu7x:2x2x1
jax: 0.10.0
libtpu: 0.0.40
codegen_flags: <defaults>
</compile_context>

<pallas_src>
import functools

import jax
import jax.numpy as jnp
from jax import lax
from jax.experimental import pallas as pl
from jax.experimental.pallas import tpu as pltpu


def _round_up(n, m):
    return -(-n // m) * m


# ----------------------------------------------------------------------------
# Kernel: full LSTM recurrence (unrolled) + one post-loop fc matmul, all in
# VMEM.  Gate extraction uses lane slices of the fused (B_pad, 4H) gate tile;
# at H=8 these are a handful of off-chain XLU lane selects (free filler while
# the VPU/MXU own the critical path).
# ----------------------------------------------------------------------------
def decoder_kernel(p_ref, out_ref, *, B_pad, F, H, T, O, offs):
    G = 4 * H
    o_x, o_wih, o_whh, o_bias, o_wfc, o_bfc = offs

    # Hoisted, static (8-aligned) sublane slices of the single packed slab.
    x = p_ref[o_x:o_x + B_pad, 0:F]                  # (B_pad, F)
    wih_t = p_ref[o_wih:o_wih + F, 0:G]              # (F, 4H)
    whh_t = p_ref[o_whh:o_whh + H, 0:G]              # (H, 4H)
    bias = p_ref[o_bias:o_bias + 1, 0:G]             # (1, 4H)  (= b_ih + b_hh)
    wfc_big = p_ref[o_wfc:o_wfc + T * H, 0:T * O]    # (T*H, T*O) block-diag fc
    bfc_big = p_ref[o_bfc:o_bfc + 1, 0:T * O]        # (1, T*O)

    # Time-invariant input contribution to the gates (input row is repeated).
    xg = jnp.dot(x, wih_t, preferred_element_type=jnp.float32) + bias  # (Bp,4H)

    h = jnp.zeros((B_pad, H), jnp.float32)
    c = jnp.zeros((B_pad, H), jnp.float32)
    hs = []
    # Fully unrolled recurrence (T is small & static).
    for _ in range(T):
        gates = xg + jnp.dot(h, whh_t, preferred_element_type=jnp.float32)
        i_g = jax.nn.sigmoid(gates[:, 0 * H:1 * H])
        f_g = jax.nn.sigmoid(gates[:, 1 * H:2 * H])
        g_g = jnp.tanh(gates[:, 2 * H:3 * H])
        o_g = jax.nn.sigmoid(gates[:, 3 * H:4 * H])
        c = f_g * c + i_g * g_g
        h = o_g * jnp.tanh(c)
        hs.append(h)

    # One matmul + one lane-dense store for the whole fc epilogue.
    h_cat = jnp.concatenate(hs, axis=1)               # (B_pad, T*H)
    out_ref[...] = (
        jnp.dot(h_cat, wfc_big, preferred_element_type=jnp.float32) + bfc_big
    )                                                 # (B_pad, T*O)


# ----------------------------------------------------------------------------
# Slab packing: x_pad + all parameters into one (rows, W) float32 array, every
# block starting at an 8-aligned sublane offset -> exactly one input DMA.
# The fc weight is expanded to a block-diagonal (T*H, T*O) matrix so the
# per-timestep Linear becomes a single matmul whose output is already laid out
# as (B, T*O) row-major == (B, T, O).
# ----------------------------------------------------------------------------
def _pack_slab(x_pad, params, T):
    w_ih, w_hh, b_ih, b_hh, w_fc, b_fc = params
    G, F = w_ih.shape                 # (4H, F)
    H = w_hh.shape[1]
    O = w_fc.shape[0]
    W = max(G, T * O, F)              # packed lane width

    f32 = jnp.float32
    blocks = [
        x_pad.astype(f32),                                     # (B_pad, F)
        jnp.transpose(w_ih).astype(f32),                       # (F, 4H)
        jnp.transpose(w_hh).astype(f32),                       # (H, 4H)
        (b_ih + b_hh).reshape(1, G).astype(f32),               # (1, 4H)
        jnp.kron(jnp.eye(T, dtype=f32),
                 jnp.transpose(w_fc).astype(f32)),             # (T*H, T*O)
        jnp.tile(b_fc.astype(f32), T).reshape(1, T * O),       # (1, T*O)
    ]

    offs, rows, r = [], [], 0
    for blk in blocks:
        offs.append(r)
        rpad = _round_up(blk.shape[0], 8)
        padded = jnp.zeros((rpad, W), f32)
        padded = padded.at[:blk.shape[0], :blk.shape[1]].set(blk)
        rows.append(padded)
        r += rpad
    packed = jnp.concatenate(rows, axis=0)            # (~104, 32) ≈ 13 KiB
    return packed, tuple(offs)


# ----------------------------------------------------------------------------
# Wrapper: pad batch to a full sublane tile, pack everything into one slab
# (1 input DMA), single grid-less pallas_call, then slice + free reshape.
# ----------------------------------------------------------------------------
def decoder_forward(x, params, seq_len):
    """x: (B, F) float32 -> (B, seq_len, output_size) float32."""
    w_ih, w_hh, b_ih, b_hh, w_fc, b_fc = params
    B, F = x.shape
    H = w_hh.shape[1]
    O = w_fc.shape[0]
    T = seq_len

    B_pad = _round_up(max(B, 8), 8)
    x_pad = jnp.zeros((B_pad, F), jnp.float32).at[:B].set(x.astype(jnp.float32))

    slab, offs = _pack_slab(x_pad, params, T)

    kernel = functools.partial(decoder_kernel, B_pad=B_pad, F=F, H=H, T=T, O=O,
                               offs=offs)
    vmem = pl.BlockSpec(memory_space=pltpu.MemorySpace.VMEM)
    out_flat = pl.pallas_call(
        kernel,
        out_shape=jax.ShapeDtypeStruct((B_pad, T * O), jnp.float32),
        in_specs=[vmem],
        out_specs=vmem,
    )(slab)

    # (B_pad, T*O) -> (B, T, O): slice padding rows, row-major reshape (free).
    return out_flat[:B].reshape(B, T, O)


# ----------------------------------------------------------------------------
# Pure-JAX reference (mirrors torch.nn.LSTM + Linear) for a correctness check.
# ----------------------------------------------------------------------------
def decoder_reference(x, params, seq_len):
    w_ih, w_hh, b_ih, b_hh, w_fc, b_fc = params
    B, _ = x.shape
    H = w_hh.shape[1]

    xg = x @ w_ih.T + b_ih + b_hh                 # (B, 4H), same every step

    def step(carry, _):
        h, c = carry
        gates = xg + h @ w_hh.T
        i = jax.nn.sigmoid(gates[:, 0 * H:1 * H])
        f = jax.nn.sigmoid(gates[:, 1 * H:2 * H])
        g = jnp.tanh(gates[:, 2 * H:3 * H])
        o = jax.nn.sigmoid(gates[:, 3 * H:4 * H])
        c = f * c + i * g
        h = o * jnp.tanh(c)
        return (h, c), h

    (_, _), hs = lax.scan(step, (jnp.zeros((B, H)), jnp.zeros((B, H))),
                          None, length=seq_len)
    hs = jnp.transpose(hs, (1, 0, 2))             # (B, T, H)
    return hs @ w_fc.T + b_fc


# ----------------------------------------------------------------------------
def make_params(key, no_features, hidden_size, output_size):
    """Deterministic synthetic parameters (PyTorch-like uniform init)."""
    ks = jax.random.split(key, 6)
    bound = 1.0 / jnp.sqrt(hidden_size)
    w_ih = jax.random.uniform(ks[0], (4 * hidden_size, no_features),
                              jnp.float32, -bound, bound)
    w_hh = jax.random.uniform(ks[1], (4 * hidden_size, hidden_size),
                              jnp.float32, -bound, bound)
    b_ih = jax.random.uniform(ks[2], (4 * hidden_size,),
                              jnp.float32, -bound, bound)
    b_hh = jax.random.uniform(ks[3], (4 * hidden_size,),
                              jnp.float32, -bound, bound)
    w_fc = jax.random.uniform(ks[4], (output_size, hidden_size),
                              jnp.float32, -bound, bound)
    b_fc = jax.random.uniform(ks[5], (output_size,),
                              jnp.float32, -bound, bound)
    return (w_ih, w_hh, b_ih, b_hh, w_fc, b_fc)


if __name__ == "__main__":
    batch = 2
    seq_len = 8
    no_features = 4
    hidden_size = 2 * no_features
    output_size = 4

    key = jax.random.PRNGKey(0)
    k_x, k_p = jax.random.split(key)
    x = jax.random.normal(k_x, (batch, no_features), jnp.float32)
    params = make_params(k_p, no_features, hidden_size, output_size)

    fwd = jax.jit(functools.partial(decoder_forward, seq_len=seq_len))
    out = fwd(x, params)
    out = jax.block_until_ready(out)

    assert out.shape == (batch, seq_len, output_size), out.shape

    ref = decoder_reference(x, params, seq_len)
    if not jnp.allclose(out, ref, rtol=1e-5, atol=1e-5):
        raise AssertionError("Pallas output does not match JAX reference")

    print("KERNEL_OK")
</pallas_src>

<mosaic_0001>
module attributes {stable_mosaic.version = 11 : i64} {
  func.func @decoder_kernel(%arg0: memref<104x32xf32, #tpu.memory_space<vmem>>, %arg1: memref<8x32xf32, #tpu.memory_space<vmem>>) attributes {dimension_semantics = [], scalar_prefetch = 0 : i64, scratch_operands = 0 : i64, tpu.core_type = #tpu.core_type<tc>} {
    %c0 = arith.constant 0 : index
    %c0_0 = arith.constant 0 : index
    %0 = vector.load %arg0[%c0, %c0_0] : memref<104x32xf32, #tpu.memory_space<vmem>>, vector<8x4xf32>
    %c8 = arith.constant 8 : index
    %c0_1 = arith.constant 0 : index
    %1 = vector.load %arg0[%c8, %c0_1] : memref<104x32xf32, #tpu.memory_space<vmem>>, vector<4x32xf32>
    %c16 = arith.constant 16 : index
    %c0_2 = arith.constant 0 : index
    %2 = vector.load %arg0[%c16, %c0_2] : memref<104x32xf32, #tpu.memory_space<vmem>>, vector<8x32xf32>
    %c24 = arith.constant 24 : index
    %c0_3 = arith.constant 0 : index
    %3 = vector.load %arg0[%c24, %c0_3] : memref<104x32xf32, #tpu.memory_space<vmem>>, vector<1x32xf32>
    %c32 = arith.constant 32 : index
    %c0_4 = arith.constant 0 : index
    %4 = vector.load %arg0[%c32, %c0_4] : memref<104x32xf32, #tpu.memory_space<vmem>>, vector<64x32xf32>
    %c96 = arith.constant 96 : index
    %c0_5 = arith.constant 0 : index
    %5 = vector.load %arg0[%c96, %c0_5] : memref<104x32xf32, #tpu.memory_space<vmem>>, vector<1x32xf32>
    %cst = arith.constant dense<0.000000e+00> : vector<8x32xf32>
    %6 = tpu.matmul %0, %1, %cst {dimension_numbers = #tpu.dot_dimension_numbers<[1], [0], [0], [1], [0, 0, 1, 1], [], []>} : vector<8x4xf32>, vector<4x32xf32>, vector<8x32xf32> -> vector<8x32xf32>
    %7 = vector.broadcast %3 : vector<1x32xf32> to vector<8x32xf32>
    %8 = arith.addf %6, %7 : vector<8x32xf32>
    %cst_6 = arith.constant 0.000000e+00 : f32
    %9 = vector.broadcast %cst_6 : f32 to vector<8x8xf32>
    %cst_7 = arith.constant 0.000000e+00 : f32
    %10 = vector.broadcast %cst_7 : f32 to vector<8x8xf32>
    %cst_8 = arith.constant dense<0.000000e+00> : vector<8x32xf32>
    %11 = tpu.matmul %9, %2, %cst_8 {dimension_numbers = #tpu.dot_dimension_numbers<[1], [0], [0], [1], [0, 0, 1, 1], [], []>} : vector<8x8xf32>, vector<8x32xf32>, vector<8x32xf32> -> vector<8x32xf32>
    %12 = arith.addf %8, %11 : vector<8x32xf32>
    %13 = vector.extract_strided_slice %12 {offsets = [0, 0], sizes = [8, 8], strides = [1, 1]} : vector<8x32xf32> to vector<8x8xf32>
    %14 = arith.negf %13 : vector<8x8xf32>
    %15 = math.exp %14 : vector<8x8xf32>
    %cst_9 = arith.constant 1.000000e+00 : f32
    %16 = vector.broadcast %cst_9 : f32 to vector<8x8xf32>
    %17 = arith.addf %16, %15 : vector<8x8xf32>
    %18 = arith.divf %16, %17 : vector<8x8xf32>
    %19 = vector.extract_strided_slice %12 {offsets = [0, 8], sizes = [8, 8], strides = [1, 1]} : vector<8x32xf32> to vector<8x8xf32>
    %20 = arith.negf %19 : vector<8x8xf32>
    %21 = math.exp %20 : vector<8x8xf32>
    %cst_10 = arith.constant 1.000000e+00 : f32
    %22 = vector.broadcast %cst_10 : f32 to vector<8x8xf32>
    %23 = arith.addf %22, %21 : vector<8x8xf32>
    %24 = arith.divf %22, %23 : vector<8x8xf32>
    %25 = vector.extract_strided_slice %12 {offsets = [0, 16], sizes = [8, 8], strides = [1, 1]} : vector<8x32xf32> to vector<8x8xf32>
    %26 = math.tanh %25 : vector<8x8xf32>
    %27 = vector.extract_strided_slice %12 {offsets = [0, 24], sizes = [8, 8], strides = [1, 1]} : vector<8x32xf32> to vector<8x8xf32>
    %28 = arith.negf %27 : vector<8x8xf32>
    %29 = math.exp %28 : vector<8x8xf32>
    %cst_11 = arith.constant 1.000000e+00 : f32
    %30 = vector.broadcast %cst_11 : f32 to vector<8x8xf32>
    %31 = arith.addf %30, %29 : vector<8x8xf32>
    %32 = arith.divf %30, %31 : vector<8x8xf32>
    %33 = arith.mulf %24, %10 : vector<8x8xf32>
    %34 = arith.mulf %18, %26 : vector<8x8xf32>
    %35 = arith.addf %33, %34 : vector<8x8xf32>
    %36 = math.tanh %35 : vector<8x8xf32>
    %37 = arith.mulf %32, %36 : vector<8x8xf32>
    %cst_12 = arith.constant dense<0.000000e+00> : vector<8x32xf32>
    %38 = tpu.matmul %37, %2, %cst_12 {dimension_numbers = #tpu.dot_dimension_numbers<[1], [0], [0], [1], [0, 0, 1, 1], [], []>} : vector<8x8xf32>, vector<8x32xf32>, vector<8x32xf32> -> vector<8x32xf32>
    %39 = arith.addf %8, %38 : vector<8x32xf32>
    %40 = vector.extract_strided_slice %39 {offsets = [0, 0], sizes = [8, 8], strides = [1, 1]} : vector<8x32xf32> to vector<8x8xf32>
    %41 = arith.negf %40 : vector<8x8xf32>
    %42 = math.exp %41 : vector<8x8xf32>
    %cst_13 = arith.constant 1.000000e+00 : f32
    %43 = vector.broadcast %cst_13 : f32 to vector<8x8xf32>
    %44 = arith.addf %43, %42 : vector<8x8xf32>
    %45 = arith.divf %43, %44 : vector<8x8xf32>
    %46 = vector.extract_strided_slice %39 {offsets = [0, 8], sizes = [8, 8], strides = [1, 1]} : vector<8x32xf32> to vector<8x8xf32>
    %47 = arith.negf %46 : vector<8x8xf32>
    %48 = math.exp %47 : vector<8x8xf32>
    %cst_14 = arith.constant 1.000000e+00 : f32
    %49 = vector.broadcast %cst_14 : f32 to vector<8x8xf32>
    %50 = arith.addf %49, %48 : vector<8x8xf32>
    %51 = arith.divf %49, %50 : vector<8x8xf32>
    %52 = vector.extract_strided_slice %39 {offsets = [0, 16], sizes = [8, 8], strides = [1, 1]} : vector<8x32xf32> to vector<8x8xf32>
    %53 = math.tanh %52 : vector<8x8xf32>
    %54 = vector.extract_strided_slice %39 {offsets = [0, 24], sizes = [8, 8], strides = [1, 1]} : vector<8x32xf32> to vector<8x8xf32>
    %55 = arith.negf %54 : vector<8x8xf32>
    %56 = math.exp %55 : vector<8x8xf32>
    %cst_15 = arith.constant 1.000000e+00 : f32
    %57 = vector.broadcast %cst_15 : f32 to vector<8x8xf32>
    %58 = arith.addf %57, %56 : vector<8x8xf32>
    %59 = arith.divf %57, %58 : vector<8x8xf32>
    %60 = arith.mulf %51, %35 : vector<8x8xf32>
    %61 = arith.mulf %45, %53 : vector<8x8xf32>
    %62 = arith.addf %60, %61 : vector<8x8xf32>
    %63 = math.tanh %62 : vector<8x8xf32>
    %64 = arith.mulf %59, %63 : vector<8x8xf32>
    %cst_16 = arith.constant dense<0.000000e+00> : vector<8x32xf32>
    %65 = tpu.matmul %64, %2, %cst_16 {dimension_numbers = #tpu.dot_dimension_numbers<[1], [0], [0], [1], [0, 0, 1, 1], [], []>} : vector<8x8xf32>, vector<8x32xf32>, vector<8x32xf32> -> vector<8x32xf32>
    %66 = arith.addf %8, %65 : vector<8x32xf32>
    %67 = vector.extract_strided_slice %66 {offsets = [0, 0], sizes = [8, 8], strides = [1, 1]} : vector<8x32xf32> to vector<8x8xf32>
    %68 = arith.negf %67 : vector<8x8xf32>
    %69 = math.exp %68 : vector<8x8xf32>
    %cst_17 = arith.constant 1.000000e+00 : f32
    %70 = vector.broadcast %cst_17 : f32 to vector<8x8xf32>
    %71 = arith.addf %70, %69 : vector<8x8xf32>
    %72 = arith.divf %70, %71 : vector<8x8xf32>
    %73 = vector.extract_strided_slice %66 {offsets = [0, 8], sizes = [8, 8], strides = [1, 1]} : vector<8x32xf32> to vector<8x8xf32>
    %74 = arith.negf %73 : vector<8x8xf32>
    %75 = math.exp %74 : vector<8x8xf32>
    %cst_18 = arith.constant 1.000000e+00 : f32
    %76 = vector.broadcast %cst_18 : f32 to vector<8x8xf32>
    %77 = arith.addf %76, %75 : vector<8x8xf32>
    %78 = arith.divf %76, %77 : vector<8x8xf32>
    %79 = vector.extract_strided_slice %66 {offsets = [0, 16], sizes = [8, 8], strides = [1, 1]} : vector<8x32xf32> to vector<8x8xf32>
    %80 = math.tanh %79 : vector<8x8xf32>
    %81 = vector.extract_strided_slice %66 {offsets = [0, 24], sizes = [8, 8], strides = [1, 1]} : vector<8x32xf32> to vector<8x8xf32>
    %82 = arith.negf %81 : vector<8x8xf32>
    %83 = math.exp %82 : vector<8x8xf32>
    %cst_19 = arith.constant 1.000000e+00 : f32
    %84 = vector.broadcast %cst_19 : f32 to vector<8x8xf32>
    %85 = arith.addf %84, %83 : vector<8x8xf32>
    %86 = arith.divf %84, %85 : vector<8x8xf32>
    %87 = arith.mulf %78, %62 : vector<8x8xf32>
    %88 = arith.mulf %72, %80 : vector<8x8xf32>
    %89 = arith.addf %87, %88 : vector<8x8xf32>
    %90 = math.tanh %89 : vector<8x8xf32>
    %91 = arith.mulf %86, %90 : vector<8x8xf32>
    %cst_20 = arith.constant dense<0.000000e+00> : vector<8x32xf32>
    %92 = tpu.matmul %91, %2, %cst_20 {dimension_numbers = #tpu.dot_dimension_numbers<[1], [0], [0], [1], [0, 0, 1, 1], [], []>} : vector<8x8xf32>, vector<8x32xf32>, vector<8x32xf32> -> vector<8x32xf32>
    %93 = arith.addf %8, %92 : vector<8x32xf32>
    %94 = vector.extract_strided_slice %93 {offsets = [0, 0], sizes = [8, 8], strides = [1, 1]} : vector<8x32xf32> to vector<8x8xf32>
    %95 = arith.negf %94 : vector<8x8xf32>
    %96 = math.exp %95 : vector<8x8xf32>
    %cst_21 = arith.constant 1.000000e+00 : f32
    %97 = vector.broadcast %cst_21 : f32 to vector<8x8xf32>
    %98 = arith.addf %97, %96 : vector<8x8xf32>
    %99 = arith.divf %97, %98 : vector<8x8xf32>
    %100 = vector.extract_strided_slice %93 {offsets = [0, 8], sizes = [8, 8], strides = [1, 1]} : vector<8x32xf32> to vector<8x8xf32>
    %101 = arith.negf %100 : vector<8x8xf32>
    %102 = math.exp %101 : vector<8x8xf32>
    %cst_22 = arith.constant 1.000000e+00 : f32
    %103 = vector.broadcast %cst_22 : f32 to vector<8x8xf32>
    %104 = arith.addf %103, %102 : vector<8x8xf32>
    %105 = arith.divf %103, %104 : vector<8x8xf32>
    %106 = vector.extract_strided_slice %93 {offsets = [0, 16], sizes = [8, 8], strides = [1, 1]} : vector<8x32xf32> to vector<8x8xf32>
    %107 = math.tanh %106 : vector<8x8xf32>
    %108 = vector.extract_strided_slice %93 {offsets = [0, 24], sizes = [8, 8], strides = [1, 1]} : vector<8x32xf32> to vector<8x8xf32>
    %109 = arith.negf %108 : vector<8x8xf32>
    %110 = math.exp %109 : vector<8x8xf32>
    %cst_23 = arith.constant 1.000000e+00 : f32
    %111 = vector.broadcast %cst_23 : f32 to vector<8x8xf32>
    %112 = arith.addf %111, %110 : vector<8x8xf32>
    %113 = arith.divf %111, %112 : vector<8x8xf32>
    %114 = arith.mulf %105, %89 : vector<8x8xf32>
    %115 = arith.mulf %99, %107 : vector<8x8xf32>
    %116 = arith.addf %114, %115 : vector<8x8xf32>
    %117 = math.tanh %116 : vector<8x8xf32>
    %118 = arith.mulf %113, %117 : vector<8x8xf32>
    %cst_24 = arith.constant dense<0.000000e+00> : vector<8x32xf32>
    %119 = tpu.matmul %118, %2, %cst_24 {dimension_numbers = #tpu.dot_dimension_numbers<[1], [0], [0], [1], [0, 0, 1, 1], [], []>} : vector<8x8xf32>, vector<8x32xf32>, vector<8x32xf32> -> vector<8x32xf32>
    %120 = arith.addf %8, %119 : vector<8x32xf32>
    %121 = vector.extract_strided_slice %120 {offsets = [0, 0], sizes = [8, 8], strides = [1, 1]} : vector<8x32xf32> to vector<8x8xf32>
    %122 = arith.negf %121 : vector<8x8xf32>
    %123 = math.exp %122 : vector<8x8xf32>
    %cst_25 = arith.constant 1.000000e+00 : f32
    %124 = vector.broadcast %cst_25 : f32 to vector<8x8xf32>
    %125 = arith.addf %124, %123 : vector<8x8xf32>
    %126 = arith.divf %124, %125 : vector<8x8xf32>
    %127 = vector.extract_strided_slice %120 {offsets = [0, 8], sizes = [8, 8], strides = [1, 1]} : vector<8x32xf32> to vector<8x8xf32>
    %128 = arith.negf %127 : vector<8x8xf32>
    %129 = math.exp %128 : vector<8x8xf32>
    %cst_26 = arith.constant 1.000000e+00 : f32
    %130 = vector.broadcast %cst_26 : f32 to vector<8x8xf32>
    %131 = arith.addf %130, %129 : vector<8x8xf32>
    %132 = arith.divf %130, %131 : vector<8x8xf32>
    %133 = vector.extract_strided_slice %120 {offsets = [0, 16], sizes = [8, 8], strides = [1, 1]} : vector<8x32xf32> to vector<8x8xf32>
    %134 = math.tanh %133 : vector<8x8xf32>
    %135 = vector.extract_strided_slice %120 {offsets = [0, 24], sizes = [8, 8], strides = [1, 1]} : vector<8x32xf32> to vector<8x8xf32>
    %136 = arith.negf %135 : vector<8x8xf32>
    %137 = math.exp %136 : vector<8x8xf32>
    %cst_27 = arith.constant 1.000000e+00 : f32
    %138 = vector.broadcast %cst_27 : f32 to vector<8x8xf32>
    %139 = arith.addf %138, %137 : vector<8x8xf32>
    %140 = arith.divf %138, %139 : vector<8x8xf32>
    %141 = arith.mulf %132, %116 : vector<8x8xf32>
    %142 = arith.mulf %126, %134 : vector<8x8xf32>
    %143 = arith.addf %141, %142 : vector<8x8xf32>
    %144 = math.tanh %143 : vector<8x8xf32>
    %145 = arith.mulf %140, %144 : vector<8x8xf32>
    %cst_28 = arith.constant dense<0.000000e+00> : vector<8x32xf32>
    %146 = tpu.matmul %145, %2, %cst_28 {dimension_numbers = #tpu.dot_dimension_numbers<[1], [0], [0], [1], [0, 0, 1, 1], [], []>} : vector<8x8xf32>, vector<8x32xf32>, vector<8x32xf32> -> vector<8x32xf32>
    %147 = arith.addf %8, %146 : vector<8x32xf32>
    %148 = vector.extract_strided_slice %147 {offsets = [0, 0], sizes = [8, 8], strides = [1, 1]} : vector<8x32xf32> to vector<8x8xf32>
    %149 = arith.negf %148 : vector<8x8xf32>
    %150 = math.exp %149 : vector<8x8xf32>
    %cst_29 = arith.constant 1.000000e+00 : f32
    %151 = vector.broadcast %cst_29 : f32 to vector<8x8xf32>
    %152 = arith.addf %151, %150 : vector<8x8xf32>
    %153 = arith.divf %151, %152 : vector<8x8xf32>
    %154 = vector.extract_strided_slice %147 {offsets = [0, 8], sizes = [8, 8], strides = [1, 1]} : vector<8x32xf32> to vector<8x8xf32>
    %155 = arith.negf %154 : vector<8x8xf32>
    %156 = math.exp %155 : vector<8x8xf32>
    %cst_30 = arith.constant 1.000000e+00 : f32
    %157 = vector.broadcast %cst_30 : f32 to vector<8x8xf32>
    %158 = arith.addf %157, %156 : vector<8x8xf32>
    %159 = arith.divf %157, %158 : vector<8x8xf32>
    %160 = vector.extract_strided_slice %147 {offsets = [0, 16], sizes = [8, 8], strides = [1, 1]} : vector<8x32xf32> to vector<8x8xf32>
    %161 = math.tanh %160 : vector<8x8xf32>
    %162 = vector.extract_strided_slice %147 {offsets = [0, 24], sizes = [8, 8], strides = [1, 1]} : vector<8x32xf32> to vector<8x8xf32>
    %163 = arith.negf %162 : vector<8x8xf32>
    %164 = math.exp %163 : vector<8x8xf32>
    %cst_31 = arith.constant 1.000000e+00 : f32
    %165 = vector.broadcast %cst_31 : f32 to vector<8x8xf32>
    %166 = arith.addf %165, %164 : vector<8x8xf32>
    %167 = arith.divf %165, %166 : vector<8x8xf32>
    %168 = arith.mulf %159, %143 : vector<8x8xf32>
    %169 = arith.mulf %153, %161 : vector<8x8xf32>
    %170 = arith.addf %168, %169 : vector<8x8xf32>
    %171 = math.tanh %170 : vector<8x8xf32>
    %172 = arith.mulf %167, %171 : vector<8x8xf32>
    %cst_32 = arith.constant dense<0.000000e+00> : vector<8x32xf32>
    %173 = tpu.matmul %172, %2, %cst_32 {dimension_numbers = #tpu.dot_dimension_numbers<[1], [0], [0], [1], [0, 0, 1, 1], [], []>} : vector<8x8xf32>, vector<8x32xf32>, vector<8x32xf32> -> vector<8x32xf32>
    %174 = arith.addf %8, %173 : vector<8x32xf32>
    %175 = vector.extract_strided_slice %174 {offsets = [0, 0], sizes = [8, 8], strides = [1, 1]} : vector<8x32xf32> to vector<8x8xf32>
    %176 = arith.negf %175 : vector<8x8xf32>
    %177 = math.exp %176 : vector<8x8xf32>
    %cst_33 = arith.constant 1.000000e+00 : f32
    %178 = vector.broadcast %cst_33 : f32 to vector<8x8xf32>
    %179 = arith.addf %178, %177 : vector<8x8xf32>
    %180 = arith.divf %178, %179 : vector<8x8xf32>
    %181 = vector.extract_strided_slice %174 {offsets = [0, 8], sizes = [8, 8], strides = [1, 1]} : vector<8x32xf32> to vector<8x8xf32>
    %182 = arith.negf %181 : vector<8x8xf32>
    %183 = math.exp %182 : vector<8x8xf32>
    %cst_34 = arith.constant 1.000000e+00 : f32
    %184 = vector.broadcast %cst_34 : f32 to vector<8x8xf32>
    %185 = arith.addf %184, %183 : vector<8x8xf32>
    %186 = arith.divf %184, %185 : vector<8x8xf32>
    %187 = vector.extract_strided_slice %174 {offsets = [0, 16], sizes = [8, 8], strides = [1, 1]} : vector<8x32xf32> to vector<8x8xf32>
    %188 = math.tanh %187 : vector<8x8xf32>
    %189 = vector.extract_strided_slice %174 {offsets = [0, 24], sizes = [8, 8], strides = [1, 1]} : vector<8x32xf32> to vector<8x8xf32>
    %190 = arith.negf %189 : vector<8x8xf32>
    %191 = math.exp %190 : vector<8x8xf32>
    %cst_35 = arith.constant 1.000000e+00 : f32
    %192 = vector.broadcast %cst_35 : f32 to vector<8x8xf32>
    %193 = arith.addf %192, %191 : vector<8x8xf32>
    %194 = arith.divf %192, %193 : vector<8x8xf32>
    %195 = arith.mulf %186, %170 : vector<8x8xf32>
    %196 = arith.mulf %180, %188 : vector<8x8xf32>
    %197 = arith.addf %195, %196 : vector<8x8xf32>
    %198 = math.tanh %197 : vector<8x8xf32>
    %199 = arith.mulf %194, %198 : vector<8x8xf32>
    %cst_36 = arith.constant dense<0.000000e+00> : vector<8x32xf32>
    %200 = tpu.matmul %199, %2, %cst_36 {dimension_numbers = #tpu.dot_dimension_numbers<[1], [0], [0], [1], [0, 0, 1, 1], [], []>} : vector<8x8xf32>, vector<8x32xf32>, vector<8x32xf32> -> vector<8x32xf32>
    %201 = arith.addf %8, %200 : vector<8x32xf32>
    %202 = vector.extract_strided_slice %201 {offsets = [0, 0], sizes = [8, 8], strides = [1, 1]} : vector<8x32xf32> to vector<8x8xf32>
    %203 = arith.negf %202 : vector<8x8xf32>
    %204 = math.exp %203 : vector<8x8xf32>
    %cst_37 = arith.constant 1.000000e+00 : f32
    %205 = vector.broadcast %cst_37 : f32 to vector<8x8xf32>
    %206 = arith.addf %205, %204 : vector<8x8xf32>
    %207 = arith.divf %205, %206 : vector<8x8xf32>
    %208 = vector.extract_strided_slice %201 {offsets = [0, 8], sizes = [8, 8], strides = [1, 1]} : vector<8x32xf32> to vector<8x8xf32>
    %209 = arith.negf %208 : vector<8x8xf32>
    %210 = math.exp %209 : vector<8x8xf32>
    %cst_38 = arith.constant 1.000000e+00 : f32
    %211 = vector.broadcast %cst_38 : f32 to vector<8x8xf32>
    %212 = arith.addf %211, %210 : vector<8x8xf32>
    %213 = arith.divf %211, %212 : vector<8x8xf32>
    %214 = vector.extract_strided_slice %201 {offsets = [0, 16], sizes = [8, 8], strides = [1, 1]} : vector<8x32xf32> to vector<8x8xf32>
    %215 = math.tanh %214 : vector<8x8xf32>
    %216 = vector.extract_strided_slice %201 {offsets = [0, 24], sizes = [8, 8], strides = [1, 1]} : vector<8x32xf32> to vector<8x8xf32>
    %217 = arith.negf %216 : vector<8x8xf32>
    %218 = math.exp %217 : vector<8x8xf32>
    %cst_39 = arith.constant 1.000000e+00 : f32
    %219 = vector.broadcast %cst_39 : f32 to vector<8x8xf32>
    %220 = arith.addf %219, %218 : vector<8x8xf32>
    %221 = arith.divf %219, %220 : vector<8x8xf32>
    %222 = arith.mulf %213, %197 : vector<8x8xf32>
    %223 = arith.mulf %207, %215 : vector<8x8xf32>
    %224 = arith.addf %222, %223 : vector<8x8xf32>
    %225 = math.tanh %224 : vector<8x8xf32>
    %226 = arith.mulf %221, %225 : vector<8x8xf32>
    %227 = tpu.concatenate %37, %64, %91, %118, %145, %172, %199, %226 in 1 : vector<8x8xf32>, vector<8x8xf32>, vector<8x8xf32>, vector<8x8xf32>, vector<8x8xf32>, vector<8x8xf32>, vector<8x8xf32>, vector<8x8xf32> -> vector<8x64xf32>
    %cst_40 = arith.constant dense<0.000000e+00> : vector<8x32xf32>
    %228 = tpu.matmul %227, %4, %cst_40 {dimension_numbers = #tpu.dot_dimension_numbers<[1], [0], [0], [1], [0, 0, 1, 1], [], []>} : vector<8x64xf32>, vector<64x32xf32>, vector<8x32xf32> -> vector<8x32xf32>
    %229 = vector.broadcast %5 : vector<1x32xf32> to vector<8x32xf32>
    %230 = arith.addf %228, %229 : vector<8x32xf32>
    %c0_41 = arith.constant 0 : index
    %c0_42 = arith.constant 0 : index
    %231 = vector.load %arg1[%c0_41, %c0_42] : memref<8x32xf32, #tpu.memory_space<vmem>>, vector<8x32xf32>
    tpu.vector_store %arg1[%c0_41, %c0_42], %230 {strides = array<i32>} : memref<8x32xf32, #tpu.memory_space<vmem>>, vector<8x32xf32>,
    return
  }
}

</mosaic_0001>

<llo_original>
// kernel: tile.8
$region0: #{tile.8}
  #allocation0 [shape = 's32[1]{0}', space=sflag, size = 0x4, scoped, tag = 'scoped memory for tile.8']
  %s0 = inlined_call_operand.vmem [shape: f32[4], index: 0, kind: input, shape index: {}]
  %s1 = inlined_call_operand.vmem [shape: f32[8,4], index: 1, kind: output, shape index: {}]
  // Predicated region
  $region2: #{tile.8} parent=0 // pred_check
    _
  $region3: #{tile.8} parent=0 // pred_check_branch
    %3 = sbr.rel (0) target = $region5
  $region4: #{tile.8} parent=0 // pred_region
    _
  $region5: #{tile.8} parent=0 // pred_fallthru
    _
  %v4 = vld [vmem:[%s0] ss:$0 sm:$0xff]
  %5 = vst [vmem:[%s1] sm:$0xff] %v4

// kernel: decoder_forward.1
$region0: #{decoder_forward.1}
  #allocation0 [shape = 'u32[]', space=smem, size = 0x4, offset = 0x4, fixed_abs, tag = 'smem constant byte address 0x4 - core index']
  #allocation1 [shape = 'u32[144,128]{1,0:T(1,128)}', space=vmem, size = 0x12000, scoped, tag = 'internal scratch']
  %s0 = inlined_call_operand.vmem [shape: f32[104,32], index: 0, kind: input, shape index: {}]
  %s1 = inlined_call_operand.vmem [shape: f32[8,32], index: 1, kind: output, shape index: {}]
  %s2 = sld [smem:[#allocation0]]
  $region14: #{decoder_forward.1} parent=0
    _
  %s4 = ssub.s32 1, %s2
  %s5 = scalar_select 0, %s4, %s2
  // Predicated region
  $region2: #{decoder_forward.1} parent=0 // pred_check
    _
  $region3: #{decoder_forward.1} parent=0 // pred_check_branch
    %7 = sbr.rel (0) target = $region5
  $region4: #{decoder_forward.1} parent=0 // pred_region
    _
  $region5: #{decoder_forward.1} parent=0 // pred_fallthru
    _
  %v8 = vld [vmem:[%s0] sm:$0xff]
  %v9 = vld [vmem:[%s0 + $0x8] sm:$0xf]
  %v10 = vld [vmem:[%s0 + $0x10] sm:$0xff]
  %v11 = vld [vmem:[%s0 + $0x18] sm:$0x1]
  %v12 = vld [vmem:[%s0 + $0x20] sm:$0xff]
  %v13 = vld [vmem:[%s0 + $0x28] sm:$0xff]
  %v14 = vld [vmem:[%s0 + $0x30] sm:$0xff]
  %v15 = vld [vmem:[%s0 + $0x38] sm:$0xff]
  %v16 = vld [vmem:[%s0 + $0x40] sm:$0xff]
  %v17 = vld [vmem:[%s0 + $0x48] sm:$0xff]
  %v18 = vld [vmem:[%s0 + $0x50] sm:$0xff]
  %v19 = vld [vmem:[%s0 + $0x58] sm:$0xff]
  %v20 = vld [vmem:[%s0 + $0x60] sm:$0x1]
  %v21 = vlaneseq
  %v22 = vshrl.u32 %v21, 7
  %v23 = vsub.s32 0, %v22
  %v24 = vrot.slane %v11, %v23
  %vm25 = vcmask 31744
  %v27 = vsel %vm25, %v8, 0
  %vm29 = vcmask 1043456
  %v31 = vsel %vm29, %v9, 0
  %33 = vmatprep.subr.mxu0 0.0
  %34 = vmatpush1.msra.mxu0 %v31
  %35 = vmatprep.subr.mxu0 0.0
  %36 = vmatpush1.msra.mxu0 0.0
  %37 = vmatprep.subr.mxu0 0.0
  %38 = vmatpush1.msra.mxu0 0.0
  %39 = vmatprep.subr.mxu0 0.0
  %40 = vmatpush1.msra.mxu0 0.0
  %41 = vmatprep.subr.mxu0 0.0
  %42 = vmatpush1.msra.mxu0 0.0
  %43 = vmatprep.subr.mxu0 0.0
  %44 = vmatpush1.msra.mxu0 0.0
  %45 = vmatprep.subr.mxu0 0.0
  %46 = vmatpush1.msra.mxu0 0.0
  %47 = vmatprep.subr.mxu0 0.0
  %48 = vmatpush1.msra.mxu0 0.0
  %49 = vmatprep.subr.mxu0 0.0
  %50 = vmatpush1.msra.mxu0 0.0
  %51 = vmatprep.subr.mxu0 0.0
  %52 = vmatpush1.msra.mxu0 0.0
  %53 = vmatprep.subr.mxu0 0.0
  %54 = vmatpush1.msra.mxu0 0.0
  %55 = vmatprep.subr.mxu0 0.0
  %56 = vmatpush1.msra.mxu0 0.0
  %57 = vmatprep.subr.mxu0 0.0
  %58 = vmatpush1.msra.mxu0 0.0
  %59 = vmatprep.subr.mxu0 0.0
  %60 = vmatpush1.msra.mxu0 0.0
  %61 = vmatprep.subr.mxu0 0.0
  %62 = vmatpush1.msra.mxu0 0.0
  %63 = vmatprep.subr.mxu0 0.0
  %64 = vmatpush1.msra.mxu0 0.0
  %65 = vmatprep.subr.mxu0 0.0
  %66 = vmatpush1.msra.mxu0 0.0
  %67 = vmatprep.subr.mxu0 0.0
  %68 = vmatpush1.msra.mxu0 0.0
  %69 = vmatprep.subr.mxu0 0.0
  %70 = vmatpush1.msra.mxu0 0.0
  %71 = vmatprep.subr.mxu0 0.0
  %72 = vmatpush1.msra.mxu0 0.0
  %73 = vmatprep.subr.mxu0 0.0
  %74 = vmatpush1.msra.mxu0 0.0
  %75 = vmatprep.subr.mxu0 0.0
  %76 = vmatpush1.msra.mxu0 0.0
  %77 = vmatprep.subr.mxu0 0.0
  %78 = vmatpush1.msra.mxu0 0.0
  %79 = vmatprep.subr.mxu0 0.0
  %80 = vmatpush1.msra.mxu0 0.0
  %81 = vmatprep.subr.mxu0 0.0
  %82 = vmatpush1.msra.mxu0 0.0
  %83 = vmatprep.subr.mxu0 0.0
  %84 = vmatpush1.msra.mxu0 0.0
  %85 = vmatprep.subr.mxu0 0.0
  %86 = vmatpush1.msra.mxu0 0.0
  %87 = vmatprep.subr.mxu0 0.0
  %88 = vmatpush1.msra.mxu0 0.0
  %89 = vmatprep.subr.mxu0 0.0
  %90 = vmatpush1.msra.mxu0 0.0
  %91 = vmatprep.subr.mxu0 0.0
  %92 = vmatpush1.msra.mxu0 0.0
  %93 = vmatprep.subr.mxu0 0.0
  %94 = vmatpush1.msra.mxu0 0.0
  %95 = vmatprep.subr.mxu0 0.0
  %96 = vmatpush1.msra.mxu0 0.0
  %97 = vmatprep.mubr.f32.mxu0 0.0
  %98 = vmatmul.mubr.f32.gmra.mrb[0].mxu0 %v27
  %v99 = vpop.f32.mrb[0].mxu0
  %v100 = vadd.f32 %v24, %v99
  %v101 = vpop.f32.mrb[0].mxu0
  %102 = vdwg.mxu0
  %vm103 = vcmask 64512
  %v105 = vsel %vm103, 0.0, 0
  %107 = vmatprep.subr.mxu0 0.0
  %108 = vmatpush1.msra.mxu0 %v10
  %109 = vmatprep.subr.mxu0 0.0
  %110 = vmatpush1.msra.mxu0 0.0
  %111 = vmatprep.subr.mxu0 0.0
  %112 = vmatpush1.msra.mxu0 0.0
  %113 = vmatprep.subr.mxu0 0.0
  %114 = vmatpush1.msra.mxu0 0.0
  %115 = vmatprep.subr.mxu0 0.0
  %116 = vmatpush1.msra.mxu0 0.0
  %117 = vmatprep.subr.mxu0 0.0
  %118 = vmatpush1.msra.mxu0 0.0
  %119 = vmatprep.subr.mxu0 0.0
  %120 = vmatpush1.msra.mxu0 0.0
  %121 = vmatprep.subr.mxu0 0.0
  %122 = vmatpush1.msra.mxu0 0.0
  %123 = vmatprep.subr.mxu0 0.0
  %124 = vmatpush1.msra.mxu0 0.0
  %125 = vmatprep.subr.mxu0 0.0
  %126 = vmatpush1.msra.mxu0 0.0
  %127 = vmatprep.subr.mxu0 0.0
  %128 = vmatpush1.msra.mxu0 0.0
  %129 = vmatprep.subr.mxu0 0.0
  %130 = vmatpush1.msra.mxu0 0.0
  %131 = vmatprep.subr.mxu0 0.0
  %132 = vmatpush1.msra.mxu0 0.0
  %133 = vmatprep.subr.mxu0 0.0
  %134 = vmatpush1.msra.mxu0 0.0
  %135 = vmatprep.subr.mxu0 0.0
  %136 = vmatpush1.msra.mxu0 0.0
  %137 = vmatprep.subr.mxu0 0.0
  %138 = vmatpush1.msra.mxu0 0.0
  %139 = vmatprep.subr.mxu0 0.0
  %140 = vmatpush1.msra.mxu0 0.0
  %141 = vmatprep.subr.mxu0 0.0
  %142 = vmatpush1.msra.mxu0 0.0
  %143 = vmatprep.subr.mxu0 0.0
  %144 = vmatpush1.msra.mxu0 0.0
  %145 = vmatprep.subr.mxu0 0.0
  %146 = vmatpush1.msra.mxu0 0.0
  %147 = vmatprep.subr.mxu0 0.0
  %148 = vmatpush1.msra.mxu0 0.0
  %149 = vmatprep.subr.mxu0 0.0
  %150 = vmatpush1.msra.mxu0 0.0
  %151 = vmatprep.subr.mxu0 0.0
  %152 = vmatpush1.msra.mxu0 0.0
  %153 = vmatprep.subr.mxu0 0.0
  %154 = vmatpush1.msra.mxu0 0.0
  %155 = vmatprep.subr.mxu0 0.0
  %156 = vmatpush1.msra.mxu0 0.0
  %157 = vmatprep.subr.mxu0 0.0
  %158 = vmatpush1.msra.mxu0 0.0
  %159 = vmatprep.subr.mxu0 0.0
  %160 = vmatpush1.msra.mxu0 0.0
  %161 = vmatprep.subr.mxu0 0.0
  %162 = vmatpush1.msra.mxu0 0.0
  %163 = vmatprep.subr.mxu0 0.0
  %164 = vmatpush1.msra.mxu0 0.0
  %165 = vmatprep.subr.mxu0 0.0
  %166 = vmatpush1.msra.mxu0 0.0
  %167 = vmatprep.subr.mxu0 0.0
  %168 = vmatpush1.msra.mxu0 0.0
  %169 = vmatprep.subr.mxu0 0.0
  %170 = vmatpush1.msra.mxu0 0.0
  %171 = vmatprep.mubr.f32.mxu0 0.0
  %172 = vmatmul.mubr.f32.gmra.mrb[0].mxu0 %v105
  %v173 = vpop.f32.mrb[0].mxu0
  %v174 = vadd.f32 0.0, %v173
  %v175 = vpop.f32.mrb[0].mxu0
  %176 = vdwg.mxu0
  %v177 = vadd.f32 %v100, %v174
  %v178 = vxor.u32 %v177, 2147483648
  %v179 = vmul.f32 %v178, 1.442695
  %v180 = vpow.pop %v179
  %v181 = vadd.f32 %v180, 1.0
  %v182 = vrcp.pop %v181
  %v183 = vmul.f32 1.0, %v182
  %v184 = vtanh.pop %v177
  %v185 = vmul.f32 %v183, 0.0
  %187 = vrot.lane.b32.xlu0 %v184, 112
  %v188 = vpop.permute.xlu0 %187
  %v190 = vmul.f32 %v183, %v188
  %192 = vrot.lane.b32.xlu0 %v190, 8
  %v193 = vpop.permute.xlu0 %192
  %v195 = vadd.f32 %v185, %v193
  %v196 = vtanh.pop %v195
  %198 = vrot.lane.b32.xlu0 %v196, 16
  %v199 = vpop.permute.xlu0 %198
  %v201 = vmul.f32 %v183, %v199
  %203 = vrot.lane.b32.xlu0 %v201, 104
  %v204 = vpop.permute.xlu0 %203
  %v205 = vsel %vm103, %v204, 0
  %207 = vmatprep.subr.mxu0 0.0
  %208 = vmatpush1.msra.mxu0 %v10
  %209 = vmatprep.subr.mxu0 0.0
  %210 = vmatpush1.msra.mxu0 0.0
  %211 = vmatprep.subr.mxu0 0.0
  %212 = vmatpush1.msra.mxu0 0.0
  %213 = vmatprep.subr.mxu0 0.0
  %214 = vmatpush1.msra.mxu0 0.0
  %215 = vmatprep.subr.mxu0 0.0
  %216 = vmatpush1.msra.mxu0 0.0
  %217 = vmatprep.subr.mxu0 0.0
  %218 = vmatpush1.msra.mxu0 0.0
  %219 = vmatprep.subr.mxu0 0.0
  %220 = vmatpush1.msra.mxu0 0.0
  %221 = vmatprep.subr.mxu0 0.0
  %222 = vmatpush1.msra.mxu0 0.0
  %223 = vmatprep.subr.mxu0 0.0
  %224 = vmatpush1.msra.mxu0 0.0
  %225 = vmatprep.subr.mxu0 0.0
  %226 = vmatpush1.msra.mxu0 0.0
  %227 = vmatprep.subr.mxu0 0.0
  %228 = vmatpush1.msra.mxu0 0.0
  %229 = vmatprep.subr.mxu0 0.0
  %230 = vmatpush1.msra.mxu0 0.0
  %231 = vmatprep.subr.mxu0 0.0
  %232 = vmatpush1.msra.mxu0 0.0
  %233 = vmatprep.subr.mxu0 0.0
  %234 = vmatpush1.msra.mxu0 0.0
  %235 = vmatprep.subr.mxu0 0.0
  %236 = vmatpush1.msra.mxu0 0.0
  %237 = vmatprep.subr.mxu0 0.0
  %238 = vmatpush1.msra.mxu0 0.0
  %239 = vmatprep.subr.mxu0 0.0
  %240 = vmatpush1.msra.mxu0 0.0
  %241 = vmatprep.subr.mxu0 0.0
  %242 = vmatpush1.msra.mxu0 0.0
  %243 = vmatprep.subr.mxu0 0.0
  %244 = vmatpush1.msra.mxu0 0.0
  %245 = vmatprep.subr.mxu0 0.0
  %246 = vmatpush1.msra.mxu0 0.0
  %247 = vmatprep.subr.mxu0 0.0
  %248 = vmatpush1.msra.mxu0 0.0
  %249 = vmatprep.subr.mxu0 0.0
  %250 = vmatpush1.msra.mxu0 0.0
  %251 = vmatprep.subr.mxu0 0.0
  %252 = vmatpush1.msra.mxu0 0.0
  %253 = vmatprep.subr.mxu0 0.0
  %254 = vmatpush1.msra.mxu0 0.0
  %255 = vmatprep.subr.mxu0 0.0
  %256 = vmatpush1.msra.mxu0 0.0
  %257 = vmatprep.subr.mxu0 0.0
  %258 = vmatpush1.msra.mxu0 0.0
  %259 = vmatprep.subr.mxu0 0.0
  %260 = vmatpush1.msra.mxu0 0.0
  %261 = vmatprep.subr.mxu0 0.0
  %262 = vmatpush1.msra.mxu0 0.0
  %263 = vmatprep.subr.mxu0 0.0
  %264 = vmatpush1.msra.mxu0 0.0
  %265 = vmatprep.subr.mxu0 0.0
  %266 = vmatpush1.msra.mxu0 0.0
  %267 = vmatprep.subr.mxu0 0.0
  %268 = vmatpush1.msra.mxu0 0.0
  %269 = vmatprep.subr.mxu0 0.0
  %270 = vmatpush1.msra.mxu0 0.0
  %271 = vmatprep.mubr.f32.mxu0 0.0
  %272 = vmatmul.mubr.f32.gmra.mrb[0].mxu0 %v205
  %v273 = vpop.f32.mrb[0].mxu0
  %v274 = vadd.f32 0.0, %v273
  %v275 = vpop.f32.mrb[0].mxu0
  %276 = vdwg.mxu0
  %v277 = vadd.f32 %v100, %v274
  %v278 = vxor.u32 %v277, 2147483648
  %v279 = vmul.f32 %v278, 1.442695
  %v280 = vpow.pop %v279
  %v281 = vadd.f32 %v280, 1.0
  %v282 = vrcp.pop %v281
  %v283 = vmul.f32 1.0, %v282
  %v284 = vtanh.pop %v277
  %v285 = vmul.f32 %v283, %v195
  %287 = vrot.lane.b32.xlu0 %v284, 112
  %v288 = vpop.permute.xlu0 %287
  %v290 = vmul.f32 %v283, %v288
  %292 = vrot.lane.b32.xlu0 %v290, 8
  %v293 = vpop.permute.xlu0 %292
  %v295 = vadd.f32 %v285, %v293
  %v296 = vtanh.pop %v295
  %298 = vrot.lane.b32.xlu0 %v296, 16
  %v299 = vpop.permute.xlu0 %298
  %v301 = vmul.f32 %v283, %v299
  %303 = vrot.lane.b32.xlu0 %v301, 104
  %v304 = vpop.permute.xlu0 %303
  %v305 = vsel %vm103, %v304, 0
  %307 = vmatprep.subr.mxu0 0.0
  %308 = vmatpush1.msra.mxu0 %v10
  %309 = vmatprep.subr.mxu0 0.0
  %310 = vmatpush1.msra.mxu0 0.0
  %311 = vmatprep.subr.mxu0 0.0
  %312 = vmatpush1.msra.mxu0 0.0
  %313 = vmatprep.subr.mxu0 0.0
  %314 = vmatpush1.msra.mxu0 0.0
  %315 = vmatprep.subr.mxu0 0.0
  %316 = vmatpush1.msra.mxu0 0.0
  %317 = vmatprep.subr.mxu0 0.0
  %318 = vmatpush1.msra.mxu0 0.0
  %319 = vmatprep.subr.mxu0 0.0
  %320 = vmatpush1.msra.mxu0 0.0
  %321 = vmatprep.subr.mxu0 0.0
  %322 = vmatpush1.msra.mxu0 0.0
  %323 = vmatprep.subr.mxu0 0.0
  %324 = vmatpush1.msra.mxu0 0.0
  %325 = vmatprep.subr.mxu0 0.0
  %326 = vmatpush1.msra.mxu0 0.0
  %327 = vmatprep.subr.mxu0 0.0
  %328 = vmatpush1.msra.mxu0 0.0
  %329 = vmatprep.subr.mxu0 0.0
  %330 = vmatpush1.msra.mxu0 0.0
  %331 = vmatprep.subr.mxu0 0.0
  %332 = vmatpush1.msra.mxu0 0.0
  %333 = vmatprep.subr.mxu0 0.0
  %334 = vmatpush1.msra.mxu0 0.0
  %335 = vmatprep.subr.mxu0 0.0
  %336 = vmatpush1.msra.mxu0 0.0
  %337 = vmatprep.subr.mxu0 0.0
  %338 = vmatpush1.msra.mxu0 0.0
  %339 = vmatprep.subr.mxu0 0.0
  %340 = vmatpush1.msra.mxu0 0.0
  %341 = vmatprep.subr.mxu0 0.0
  %342 = vmatpush1.msra.mxu0 0.0
  %343 = vmatprep.subr.mxu0 0.0
  %344 = vmatpush1.msra.mxu0 0.0
  %345 = vmatprep.subr.mxu0 0.0
  %346 = vmatpush1.msra.mxu0 0.0
  %347 = vmatprep.subr.mxu0 0.0
  %348 = vmatpush1.msra.mxu0 0.0
  %349 = vmatprep.subr.mxu0 0.0
  %350 = vmatpush1.msra.mxu0 0.0
  %351 = vmatprep.subr.mxu0 0.0
  %352 = vmatpush1.msra.mxu0 0.0
  %353 = vmatprep.subr.mxu0 0.0
  %354 = vmatpush1.msra.mxu0 0.0
  %355 = vmatprep.subr.mxu0 0.0
  %356 = vmatpush1.msra.mxu0 0.0
  %357 = vmatprep.subr.mxu0 0.0
  %358 = vmatpush1.msra.mxu0 0.0
  %359 = vmatprep.subr.mxu0 0.0
  %360 = vmatpush1.msra.mxu0 0.0
  %361 = vmatprep.subr.mxu0 0.0
  %362 = vmatpush1.msra.mxu0 0.0
  %363 = vmatprep.subr.mxu0 0.0
  %364 = vmatpush1.msra.mxu0 0.0
  %365 = vmatprep.subr.mxu0 0.0
  %366 = vmatpush1.msra.mxu0 0.0
  %367 = vmatprep.subr.mxu0 0.0
  %368 = vmatpush1.msra.mxu0 0.0
  %369 = vmatprep.subr.mxu0 0.0
  %370 = vmatpush1.msra.mxu0 0.0
  %371 = vmatprep.mubr.f32.mxu0 0.0
  %372 = vmatmul.mubr.f32.gmra.mrb[0].mxu0 %v305
  %v373 = vpop.f32.mrb[0].mxu0
  %v374 = vadd.f32 0.0, %v373
  %v375 = vpop.f32.mrb[0].mxu0
  %376 = vdwg.mxu0
  %v377 = vadd.f32 %v100, %v374
  %v378 = vxor.u32 %v377, 2147483648
  %v379 = vmul.f32 %v378, 1.442695
  %v380 = vpow.pop %v379
  %v381 = vadd.f32 %v380, 1.0
  %v382 = vrcp.pop %v381
  %v383 = vmul.f32 1.0, %v382
  %v384 = vtanh.pop %v377
  %v385 = vmul.f32 %v383, %v295
  %387 = vrot.lane.b32.xlu0 %v384, 112
  %v388 = vpop.permute.xlu0 %387
  %v390 = vmul.f32 %v383, %v388
  %392 = vrot.lane.b32.xlu0 %v390, 8
  %v393 = vpop.permute.xlu0 %392
  %v395 = vadd.f32 %v385, %v393
  %v396 = vtanh.pop %v395
  %398 = vrot.lane.b32.xlu0 %v396, 16
  %v399 = vpop.permute.xlu0 %398
  %v401 = vmul.f32 %v383, %v399
  %403 = vrot.lane.b32.xlu0 %v401, 104
  %v404 = vpop.permute.xlu0 %403
  %v405 = vsel %vm103, %v404, 0
  %407 = vmatprep.subr.mxu0 0.0
  %408 = vmatpush1.msra.mxu0 %v10
  %409 = vmatprep.subr.mxu0 0.0
  %410 = vmatpush1.msra.mxu0 0.0
  %411 = vmatprep.subr.mxu0 0.0
  %412 = vmatpush1.msra.mxu0 0.0
  %413 = vmatprep.subr.mxu0 0.0
  %414 = vmatpush1.msra.mxu0 0.0
  %415 = vmatprep.subr.mxu0 0.0
  %416 = vmatpush1.msra.mxu0 0.0
  %417 = vmatprep.subr.mxu0 0.0
  %418 = vmatpush1.msra.mxu0 0.0
  %419 = vmatprep.subr.mxu0 0.0
  %420 = vmatpush1.msra.mxu0 0.0
  %421 = vmatprep.subr.mxu0 0.0
  %422 = vmatpush1.msra.mxu0 0.0
  %423 = vmatprep.subr.mxu0 0.0
  %424 = vmatpush1.msra.mxu0 0.0
  %425 = vmatprep.subr.mxu0 0.0
  %426 = vmatpush1.msra.mxu0 0.0
  %427 = vmatprep.subr.mxu0 0.0
  %428 = vmatpush1.msra.mxu0 0.0
  %429 = vmatprep.subr.mxu0 0.0
  %430 = vmatpush1.msra.mxu0 0.0
  %431 = vmatprep.subr.mxu0 0.0
  %432 = vmatpush1.msra.mxu0 0.0
  %433 = vmatprep.subr.mxu0 0.0
  %434 = vmatpush1.msra.mxu0 0.0
  %435 = vmatprep.subr.mxu0 0.0
  %436 = vmatpush1.msra.mxu0 0.0
  %437 = vmatprep.subr.mxu0 0.0
  %438 = vmatpush1.msra.mxu0 0.0
  %439 = vmatprep.subr.mxu0 0.0
  %440 = vmatpush1.msra.mxu0 0.0
  %441 = vmatprep.subr.mxu0 0.0
  %442 = vmatpush1.msra.mxu0 0.0
  %443 = vmatprep.subr.mxu0 0.0
  %444 = vmatpush1.msra.mxu0 0.0
  %445 = vmatprep.subr.mxu0 0.0
  %446 = vmatpush1.msra.mxu0 0.0
  %447 = vmatprep.subr.mxu0 0.0
  %448 = vmatpush1.msra.mxu0 0.0
  %449 = vmatprep.subr.mxu0 0.0
  %450 = vmatpush1.msra.mxu0 0.0
  %451 = vmatprep.subr.mxu0 0.0
  %452 = vmatpush1.msra.mxu0 0.0
  %453 = vmatprep.subr.mxu0 0.0
  %454 = vmatpush1.msra.mxu0 0.0
  %455 = vmatprep.subr.mxu0 0.0
  %456 = vmatpush1.msra.mxu0 0.0
  %457 = vmatprep.subr.mxu0 0.0
  %458 = vmatpush1.msra.mxu0 0.0
  %459 = vmatprep.subr.mxu0 0.0
  %460 = vmatpush1.msra.mxu0 0.0
  %461 = vmatprep.subr.mxu0 0.0
  %462 = vmatpush1.msra.mxu0 0.0
  %463 = vmatprep.subr.mxu0 0.0
  %464 = vmatpush1.msra.mxu0 0.0
  %465 = vmatprep.subr.mxu0 0.0
  %466 = vmatpush1.msra.mxu0 0.0
  %467 = vmatprep.subr.mxu0 0.0
  %468 = vmatpush1.msra.mxu0 0.0
  %469 = vmatprep.subr.mxu0 0.0
  %470 = vmatpush1.msra.mxu0 0.0
  %471 = vmatprep.mubr.f32.mxu0 0.0
  %472 = vmatmul.mubr.f32.gmra.mrb[0].mxu0 %v405
  %v473 = vpop.f32.mrb[0].mxu0
  %v474 = vadd.f32 0.0, %v473
  %v475 = vpop.f32.mrb[0].mxu0
  %476 = vdwg.mxu0
  %v477 = vadd.f32 %v100, %v474
  %v478 = vxor.u32 %v477, 2147483648
  %v479 = vmul.f32 %v478, 1.442695
  %v480 = vpow.pop %v479
  %v481 = vadd.f32 %v480, 1.0
  %v482 = vrcp.pop %v481
  %v483 = vmul.f32 1.0, %v482
  %v484 = vtanh.pop %v477
  %v485 = vmul.f32 %v483, %v395
  %487 = vrot.lane.b32.xlu0 %v484, 112
  %v488 = vpop.permute.xlu0 %487
  %v490 = vmul.f32 %v483, %v488
  %492 = vrot.lane.b32.xlu0 %v490, 8
  %v493 = vpop.permute.xlu0 %492
  %v495 = vadd.f32 %v485, %v493
  %v496 = vtanh.pop %v495
  %498 = vrot.lane.b32.xlu0 %v496, 16
  %v499 = vpop.permute.xlu0 %498
  %v501 = vmul.f32 %v483, %v499
  %503 = vrot.lane.b32.xlu0 %v501, 104
  %v504 = vpop.permute.xlu0 %503
  %v505 = vsel %vm103, %v504, 0
  %507 = vmatprep.subr.mxu0 0.0
  %508 = vmatpush1.msra.mxu0 %v10
  %509 = vmatprep.subr.mxu0 0.0
  %510 = vmatpush1.msra.mxu0 0.0
  %511 = vmatprep.subr.mxu0 0.0
  %512 = vmatpush1.msra.mxu0 0.0
  %513 = vmatprep.subr.mxu0 0.0
  %514 = vmatpush1.msra.mxu0 0.0
  %515 = vmatprep.subr.mxu0 0.0
  %516 = vmatpush1.msra.mxu0 0.0
  %517 = vmatprep.subr.mxu0 0.0
  %518 = vmatpush1.msra.mxu0 0.0
  %519 = vmatprep.subr.mxu0 0.0
  %520 = vmatpush1.msra.mxu0 0.0
  %521 = vmatprep.subr.mxu0 0.0
  %522 = vmatpush1.msra.mxu0 0.0
  %523 = vmatprep.subr.mxu0 0.0
  %524 = vmatpush1.msra.mxu0 0.0
  %525 = vmatprep.subr.mxu0 0.0
  %526 = vmatpush1.msra.mxu0 0.0
  %527 = vmatprep.subr.mxu0 0.0
  %528 = vmatpush1.msra.mxu0 0.0
  %529 = vmatprep.subr.mxu0 0.0
  %530 = vmatpush1.msra.mxu0 0.0
  %531 = vmatprep.subr.mxu0 0.0
  %532 = vmatpush1.msra.mxu0 0.0
  %533 = vmatprep.subr.mxu0 0.0
  %534 = vmatpush1.msra.mxu0 0.0
  %535 = vmatprep.subr.mxu0 0.0
  %536 = vmatpush1.msra.mxu0 0.0
  %537 = vmatprep.subr.mxu0 0.0
  %538 = vmatpush1.msra.mxu0 0.0
  %539 = vmatprep.subr.mxu0 0.0
  %540 = vmatpush1.msra.mxu0 0.0
  %541 = vmatprep.subr.mxu0 0.0
  %542 = vmatpush1.msra.mxu0 0.0
  %543 = vmatprep.subr.mxu0 0.0
  %544 = vmatpush1.msra.mxu0 0.0
  %545 = vmatprep.subr.mxu0 0.0
  %546 = vmatpush1.msra.mxu0 0.0
  %547 = vmatprep.subr.mxu0 0.0
  %548 = vmatpush1.msra.mxu0 0.0
  %549 = vmatprep.subr.mxu0 0.0
  %550 = vmatpush1.msra.mxu0 0.0
  %551 = vmatprep.subr.mxu0 0.0
  %552 = vmatpush1.msra.mxu0 0.0
  %553 = vmatprep.subr.mxu0 0.0
  %554 = vmatpush1.msra.mxu0 0.0
  %555 = vmatprep.subr.mxu0 0.0
  %556 = vmatpush1.msra.mxu0 0.0
  %557 = vmatprep.subr.mxu0 0.0
  %558 = vmatpush1.msra.mxu0 0.0
  %559 = vmatprep.subr.mxu0 0.0
  %560 = vmatpush1.msra.mxu0 0.0
  %561 = vmatprep.subr.mxu0 0.0
  %562 = vmatpush1.msra.mxu0 0.0
  %563 = vmatprep.subr.mxu0 0.0
  %564 = vmatpush1.msra.mxu0 0.0
  %565 = vmatprep.subr.mxu0 0.0
  %566 = vmatpush1.msra.mxu0 0.0
  %567 = vmatprep.subr.mxu0 0.0
  %568 = vmatpush1.msra.mxu0 0.0
  %569 = vmatprep.subr.mxu0 0.0
  %570 = vmatpush1.msra.mxu0 0.0
  %571 = vmatprep.mubr.f32.mxu0 0.0
  %572 = vmatmul.mubr.f32.gmra.mrb[0].mxu0 %v505
  %v573 = vpop.f32.mrb[0].mxu0
  %v574 = vadd.f32 0.0, %v573
  %v575 = vpop.f32.mrb[0].mxu0
  %576 = vdwg.mxu0
  %v577 = vadd.f32 %v100, %v574
  %v578 = vxor.u32 %v577, 2147483648
  %v579 = vmul.f32 %v578, 1.442695
  %v580 = vpow.pop %v579
  %v581 = vadd.f32 %v580, 1.0
  %v582 = vrcp.pop %v581
  %v583 = vmul.f32 1.0, %v582
  %v584 = vtanh.pop %v577
  %v585 = vmul.f32 %v583, %v495
  %587 = vrot.lane.b32.xlu0 %v584, 112
  %v588 = vpop.permute.xlu0 %587
  %v590 = vmul.f32 %v583, %v588
  %592 = vrot.lane.b32.xlu0 %v590, 8
  %v593 = vpop.permute.xlu0 %592
  %v595 = vadd.f32 %v585, %v593
  %v596 = vtanh.pop %v595
  %598 = vrot.lane.b32.xlu0 %v596, 16
  %v599 = vpop.permute.xlu0 %598
  %v601 = vmul.f32 %v583, %v599
  %603 = vrot.lane.b32.xlu0 %v601, 104
  %v604 = vpop.permute.xlu0 %603
  %v605 = vsel %vm103, %v604, 0
  %607 = vmatprep.subr.mxu0 0.0
  %608 = vmatpush1.msra.mxu0 %v10
  %609 = vmatprep.subr.mxu0 0.0
  %610 = vmatpush1.msra.mxu0 0.0
  %611 = vmatprep.subr.mxu0 0.0
  %612 = vmatpush1.msra.mxu0 0.0
  %613 = vmatprep.subr.mxu0 0.0
  %614 = vmatpush1.msra.mxu0 0.0
  %615 = vmatprep.subr.mxu0 0.0
  %616 = vmatpush1.msra.mxu0 0.0
  %617 = vmatprep.subr.mxu0 0.0
  %618 = vmatpush1.msra.mxu0 0.0
  %619 = vmatprep.subr.mxu0 0.0
  %620 = vmatpush1.msra.mxu0 0.0
  %621 = vmatprep.subr.mxu0 0.0
  %622 = vmatpush1.msra.mxu0 0.0
  %623 = vmatprep.subr.mxu0 0.0
  %624 = vmatpush1.msra.mxu0 0.0
  %625 = vmatprep.subr.mxu0 0.0
  %626 = vmatpush1.msra.mxu0 0.0
  %627 = vmatprep.subr.mxu0 0.0
  %628 = vmatpush1.msra.mxu0 0.0
  %629 = vmatprep.subr.mxu0 0.0
  %630 = vmatpush1.msra.mxu0 0.0
  %631 = vmatprep.subr.mxu0 0.0
  %632 = vmatpush1.msra.mxu0 0.0
  %633 = vmatprep.subr.mxu0 0.0
  %634 = vmatpush1.msra.mxu0 0.0
  %635 = vmatprep.subr.mxu0 0.0
  %636 = vmatpush1.msra.mxu0 0.0
  %637 = vmatprep.subr.mxu0 0.0
  %638 = vmatpush1.msra.mxu0 0.0
  %639 = vmatprep.subr.mxu0 0.0
  %640 = vmatpush1.msra.mxu0 0.0
  %641 = vmatprep.subr.mxu0 0.0
  %642 = vmatpush1.msra.mxu0 0.0
  %643 = vmatprep.subr.mxu0 0.0
  %644 = vmatpush1.msra.mxu0 0.0
  %645 = vmatprep.subr.mxu0 0.0
  %646 = vmatpush1.msra.mxu0 0.0
  %647 = vmatprep.subr.mxu0 0.0
  %648 = vmatpush1.msra.mxu0 0.0
  %649 = vmatprep.subr.mxu0 0.0
  %650 = vmatpush1.msra.mxu0 0.0
  %651 = vmatprep.subr.mxu0 0.0
  %652 = vmatpush1.msra.mxu0 0.0
  %653 = vmatprep.subr.mxu0 0.0
  %654 = vmatpush1.msra.mxu0 0.0
  %655 = vmatprep.subr.mxu0 0.0
  %656 = vmatpush1.msra.mxu0 0.0
  %657 = vmatprep.subr.mxu0 0.0
  %658 = vmatpush1.msra.mxu0 0.0
  %659 = vmatprep.subr.mxu0 0.0
  %660 = vmatpush1.msra.mxu0 0.0
  %661 = vmatprep.subr.mxu0 0.0
  %662 = vmatpush1.msra.mxu0 0.0
  %663 = vmatprep.subr.mxu0 0.0
  %664 = vmatpush1.msra.mxu0 0.0
  %665 = vmatprep.subr.mxu0 0.0
  %666 = vmatpush1.msra.mxu0 0.0
  %667 = vmatprep.subr.mxu0 0.0
  %668 = vmatpush1.msra.mxu0 0.0
  %669 = vmatprep.subr.mxu0 0.0
  %670 = vmatpush1.msra.mxu0 0.0
  %671 = vmatprep.mubr.f32.mxu0 0.0
  %672 = vmatmul.mubr.f32.gmra.mrb[0].mxu0 %v605
  %v673 = vpop.f32.mrb[0].mxu0
  %v674 = vadd.f32 0.0, %v673
  %v675 = vpop.f32.mrb[0].mxu0
  %676 = vdwg.mxu0
  %v677 = vadd.f32 %v100, %v674
  %v678 = vxor.u32 %v677, 2147483648
  %v679 = vmul.f32 %v678, 1.442695
  %v680 = vpow.pop %v679
  %v681 = vadd.f32 %v680, 1.0
  %v682 = vrcp.pop %v681
  %v683 = vmul.f32 1.0, %v682
  %v684 = vtanh.pop %v677
  %v685 = vmul.f32 %v683, %v595
  %687 = vrot.lane.b32.xlu0 %v684, 112
  %v688 = vpop.permute.xlu0 %687
  %v690 = vmul.f32 %v683, %v688
  %692 = vrot.lane.b32.xlu0 %v690, 8
  %v693 = vpop.permute.xlu0 %692
  %v695 = vadd.f32 %v685, %v693
  %v696 = vtanh.pop %v695
  %698 = vrot.lane.b32.xlu0 %v696, 16
  %v699 = vpop.permute.xlu0 %698
  %v701 = vmul.f32 %v683, %v699
  %703 = vrot.lane.b32.xlu0 %v701, 104
  %v704 = vpop.permute.xlu0 %703
  %v705 = vsel %vm103, %v704, 0
  %707 = vmatprep.subr.mxu0 0.0
  %708 = vmatpush1.msra.mxu0 %v10
  %709 = vmatprep.subr.mxu0 0.0
  %710 = vmatpush1.msra.mxu0 0.0
  %711 = vmatprep.subr.mxu0 0.0
  %712 = vmatpush1.msra.mxu0 0.0
  %713 = vmatprep.subr.mxu0 0.0
  %714 = vmatpush1.msra.mxu0 0.0
  %715 = vmatprep.subr.mxu0 0.0
  %716 = vmatpush1.msra.mxu0 0.0
  %717 = vmatprep.subr.mxu0 0.0
  %718 = vmatpush1.msra.mxu0 0.0
  %719 = vmatprep.subr.mxu0 0.0
  %720 = vmatpush1.msra.mxu0 0.0
  %721 = vmatprep.subr.mxu0 0.0
  %722 = vmatpush1.msra.mxu0 0.0
  %723 = vmatprep.subr.mxu0 0.0
  %724 = vmatpush1.msra.mxu0 0.0
  %725 = vmatprep.subr.mxu0 0.0
  %726 = vmatpush1.msra.mxu0 0.0
  %727 = vmatprep.subr.mxu0 0.0
  %728 = vmatpush1.msra.mxu0 0.0
  %729 = vmatprep.subr.mxu0 0.0
  %730 = vmatpush1.msra.mxu0 0.0
  %731 = vmatprep.subr.mxu0 0.0
  %732 = vmatpush1.msra.mxu0 0.0
  %733 = vmatprep.subr.mxu0 0.0
  %734 = vmatpush1.msra.mxu0 0.0
  %735 = vmatprep.subr.mxu0 0.0
  %736 = vmatpush1.msra.mxu0 0.0
  %737 = vmatprep.subr.mxu0 0.0
  %738 = vmatpush1.msra.mxu0 0.0
  %739 = vmatprep.subr.mxu0 0.0
  %740 = vmatpush1.msra.mxu0 0.0
  %741 = vmatprep.subr.mxu0 0.0
  %742 = vmatpush1.msra.mxu0 0.0
  %743 = vmatprep.subr.mxu0 0.0
  %744 = vmatpush1.msra.mxu0 0.0
  %745 = vmatprep.subr.mxu0 0.0
  %746 = vmatpush1.msra.mxu0 0.0
  %747 = vmatprep.subr.mxu0 0.0
  %748 = vmatpush1.msra.mxu0 0.0
  %749 = vmatprep.subr.mxu0 0.0
  %750 = vmatpush1.msra.mxu0 0.0
  %751 = vmatprep.subr.mxu0 0.0
  %752 = vmatpush1.msra.mxu0 0.0
  %753 = vmatprep.subr.mxu0 0.0
  %754 = vmatpush1.msra.mxu0 0.0
  %755 = vmatprep.subr.mxu0 0.0
  %756 = vmatpush1.msra.mxu0 0.0
  %757 = vmatprep.subr.mxu0 0.0
  %758 = vmatpush1.msra.mxu0 0.0
  %759 = vmatprep.subr.mxu0 0.0
  %760 = vmatpush1.msra.mxu0 0.0
  %761 = vmatprep.subr.mxu0 0.0
  %762 = vmatpush1.msra.mxu0 0.0
  %763 = vmatprep.subr.mxu0 0.0
  %764 = vmatpush1.msra.mxu0 0.0
  %765 = vmatprep.subr.mxu0 0.0
  %766 = vmatpush1.msra.mxu0 0.0
  %767 = vmatprep.subr.mxu0 0.0
  %768 = vmatpush1.msra.mxu0 0.0
  %769 = vmatprep.subr.mxu0 0.0
  %770 = vmatpush1.msra.mxu0 0.0
  %771 = vmatprep.mubr.f32.mxu0 0.0
  %772 = vmatmul.mubr.f32.gmra.mrb[0].mxu0 %v705
  %v773 = vpop.f32.mrb[0].mxu0
  %v774 = vadd.f32 0.0, %v773
  %v775 = vpop.f32.mrb[0].mxu0
  %776 = vdwg.mxu0
  %v777 = vadd.f32 %v100, %v774
  %v778 = vxor.u32 %v777, 2147483648
  %v779 = vmul.f32 %v778, 1.442695
  %v780 = vpow.pop %v779
  %v781 = vadd.f32 %v780, 1.0
  %v782 = vrcp.pop %v781
  %v783 = vmul.f32 1.0, %v782
  %v784 = vtanh.pop %v777
  %v785 = vmul.f32 %v783, %v695
  %787 = vrot.lane.b32.xlu0 %v784, 112
  %v788 = vpop.permute.xlu0 %787
  %v790 = vmul.f32 %v783, %v788
  %792 = vrot.lane.b32.xlu0 %v790, 8
  %v793 = vpop.permute.xlu0 %792
  %v795 = vadd.f32 %v785, %v793
  %v796 = vtanh.pop %v795
  %798 = vrot.lane.b32.xlu0 %v796, 16
  %v799 = vpop.permute.xlu0 %798
  %v801 = vmul.f32 %v783, %v799
  %803 = vrot.lane.b32.xlu0 %v801, 104
  %v804 = vpop.permute.xlu0 %803
  %v805 = vsel %vm103, %v804, 0
  %807 = vmatprep.subr.mxu0 0.0
  %808 = vmatpush1.msra.mxu0 %v10
  %809 = vmatprep.subr.mxu0 0.0
  %810 = vmatpush1.msra.mxu0 0.0
  %811 = vmatprep.subr.mxu0 0.0
  %812 = vmatpush1.msra.mxu0 0.0
  %813 = vmatprep.subr.mxu0 0.0
  %814 = vmatpush1.msra.mxu0 0.0
  %815 = vmatprep.subr.mxu0 0.0
  %816 = vmatpush1.msra.mxu0 0.0
  %817 = vmatprep.subr.mxu0 0.0
  %818 = vmatpush1.msra.mxu0 0.0
  %819 = vmatprep.subr.mxu0 0.0
  %820 = vmatpush1.msra.mxu0 0.0
  %821 = vmatprep.subr.mxu0 0.0
  %822 = vmatpush1.msra.mxu0 0.0
  %823 = vmatprep.subr.mxu0 0.0
  %824 = vmatpush1.msra.mxu0 0.0
  %825 = vmatprep.subr.mxu0 0.0
  %826 = vmatpush1.msra.mxu0 0.0
  %827 = vmatprep.subr.mxu0 0.0
  %828 = vmatpush1.msra.mxu0 0.0
  %829 = vmatprep.subr.mxu0 0.0
  %830 = vmatpush1.msra.mxu0 0.0
  %831 = vmatprep.subr.mxu0 0.0
  %832 = vmatpush1.msra.mxu0 0.0
  %833 = vmatprep.subr.mxu0 0.0
  %834 = vmatpush1.msra.mxu0 0.0
  %835 = vmatprep.subr.mxu0 0.0
  %836 = vmatpush1.msra.mxu0 0.0
  %837 = vmatprep.subr.mxu0 0.0
  %838 = vmatpush1.msra.mxu0 0.0
  %839 = vmatprep.subr.mxu0 0.0
  %840 = vmatpush1.msra.mxu0 0.0
  %841 = vmatprep.subr.mxu0 0.0
  %842 = vmatpush1.msra.mxu0 0.0
  %843 = vmatprep.subr.mxu0 0.0
  %844 = vmatpush1.msra.mxu0 0.0
  %845 = vmatprep.subr.mxu0 0.0
  %846 = vmatpush1.msra.mxu0 0.0
  %847 = vmatprep.subr.mxu0 0.0
  %848 = vmatpush1.msra.mxu0 0.0
  %849 = vmatprep.subr.mxu0 0.0
  %850 = vmatpush1.msra.mxu0 0.0
  %851 = vmatprep.subr.mxu0 0.0
  %852 = vmatpush1.msra.mxu0 0.0
  %853 = vmatprep.subr.mxu0 0.0
  %854 = vmatpush1.msra.mxu0 0.0
  %855 = vmatprep.subr.mxu0 0.0
  %856 = vmatpush1.msra.mxu0 0.0
  %857 = vmatprep.subr.mxu0 0.0
  %858 = vmatpush1.msra.mxu0 0.0
  %859 = vmatprep.subr.mxu0 0.0
  %860 = vmatpush1.msra.mxu0 0.0
  %861 = vmatprep.subr.mxu0 0.0
  %862 = vmatpush1.msra.mxu0 0.0
  %863 = vmatprep.subr.mxu0 0.0
  %864 = vmatpush1.msra.mxu0 0.0
  %865 = vmatprep.subr.mxu0 0.0
  %866 = vmatpush1.msra.mxu0 0.0
  %867 = vmatprep.subr.mxu0 0.0
  %868 = vmatpush1.msra.mxu0 0.0
  %869 = vmatprep.subr.mxu0 0.0
  %870 = vmatpush1.msra.mxu0 0.0
  %871 = vmatprep.mubr.f32.mxu0 0.0
  %872 = vmatmul.mubr.f32.gmra.mrb[0].mxu0 %v805
  %v873 = vpop.f32.mrb[0].mxu0
  %v874 = vadd.f32 0.0, %v873
  %v875 = vpop.f32.mrb[0].mxu0
  %876 = vdwg.mxu0
  %v877 = vadd.f32 %v100, %v874
  %v878 = vxor.u32 %v877, 2147483648
  %v879 = vmul.f32 %v878, 1.442695
  %v880 = vpow.pop %v879
  %v881 = vadd.f32 %v880, 1.0
  %v882 = vrcp.pop %v881
  %v883 = vmul.f32 1.0, %v882
  %v884 = vtanh.pop %v877
  %v885 = vmul.f32 %v883, %v795
  %887 = vrot.lane.b32.xlu0 %v884, 112
  %v888 = vpop.permute.xlu0 %887
  %v890 = vmul.f32 %v883, %v888
  %892 = vrot.lane.b32.xlu0 %v890, 8
  %v893 = vpop.permute.xlu0 %892
  %v895 = vadd.f32 %v885, %v893
  %v896 = vtanh.pop %v895
  %898 = vrot.lane.b32.xlu0 %v896, 16
  %v899 = vpop.permute.xlu0 %898
  %v901 = vmul.f32 %v883, %v899
  %903 = vrot.lane.b32.xlu0 %v301, 112
  %v904 = vpop.permute.xlu0 %903
  %906 = vrot.lane.b32.xlu0 %v401, 120
  %v907 = vpop.permute.xlu0 %906
  %909 = vrot.lane.b32.xlu0 %v601, 8
  %v910 = vpop.permute.xlu0 %909
  %912 = vrot.lane.b32.xlu0 %v701, 16
  %v913 = vpop.permute.xlu0 %912
  %915 = vrot.lane.b32.xlu0 %v801, 24
  %v916 = vpop.permute.xlu0 %915
  %919 = vrot.lane.b32.xlu0 %v901, 32
  %v920 = vpop.permute.xlu0 %919
  %v922 = vsel %vm103, %v204, %v904
  %vm923 = vcmask 130048
  %v924 = vsel %vm923, %v922, %v907
  %vm925 = vcmask 195584
  %v926 = vsel %vm925, %v924, %v501
  %vm927 = vcmask 261120
  %v928 = vsel %vm927, %v926, %v910
  %vm929 = vcmask 326656
  %v930 = vsel %vm929, %v928, %v913
  %vm931 = vcmask 392192
  %v932 = vsel %vm931, %v930, %v916
  %vm933 = vcmask 457728
  %v934 = vsel %vm933, %v932, %v920
  %v935 = vlaneseq
  %v936 = vshrl.u32 %v935, 7
  %v937 = vsub.s32 0, %v936
  %v938 = vrot.slane %v20, %v937
  %vm939 = vcmask 523264
  %v941 = vsel %vm939, %v934, 0
  %943 = vmatprep.subr.mxu0 0.0
  %944 = vmatpush1.msra.mxu0 %v12
  %945 = vmatprep.subr.mxu0 0.0
  %946 = vmatpush1.msra.mxu0 %v13
  %947 = vmatprep.subr.mxu0 0.0
  %948 = vmatpush1.msra.mxu0 %v14
  %949 = vmatprep.subr.mxu0 0.0
  %950 = vmatpush1.msra.mxu0 %v15
  %951 = vmatprep.subr.mxu0 0.0
  %952 = vmatpush1.msra.mxu0 %v16
  %953 = vmatprep.subr.mxu0 0.0
  %954 = vmatpush1.msra.mxu0 %v17
  %955 = vmatprep.subr.mxu0 0.0
  %956 = vmatpush1.msra.mxu0 %v18
  %957 = vmatprep.subr.mxu0 0.0
  %958 = vmatpush1.msra.mxu0 %v19
  %959 = vmatprep.subr.mxu0 0.0
  %960 = vmatpush1.msra.mxu0 0.0
  %961 = vmatprep.subr.mxu0 0.0
  %962 = vmatpush1.msra.mxu0 0.0
  %963 = vmatprep.subr.mxu0 0.0
  %964 = vmatpush1.msra.mxu0 0.0
  %965 = vmatprep.subr.mxu0 0.0
  %966 = vmatpush1.msra.mxu0 0.0
  %967 = vmatprep.subr.mxu0 0.0
  %968 = vmatpush1.msra.mxu0 0.0
  %969 = vmatprep.subr.mxu0 0.0
  %970 = vmatpush1.msra.mxu0 0.0
  %971 = vmatprep.subr.mxu0 0.0
  %972 = vmatpush1.msra.mxu0 0.0
  %973 = vmatprep.subr.mxu0 0.0
  %974 = vmatpush1.msra.mxu0 0.0
  %975 = vmatprep.subr.mxu0 0.0
  %976 = vmatpush1.msra.mxu0 0.0
  %977 = vmatprep.subr.mxu0 0.0
  %978 = vmatpush1.msra.mxu0 0.0
  %979 = vmatprep.subr.mxu0 0.0
  %980 = vmatpush1.msra.mxu0 0.0
  %981 = vmatprep.subr.mxu0 0.0
  %982 = vmatpush1.msra.mxu0 0.0
  %983 = vmatprep.subr.mxu0 0.0
  %984 = vmatpush1.msra.mxu0 0.0
  %985 = vmatprep.subr.mxu0 0.0
  %986 = vmatpush1.msra.mxu0 0.0
  %987 = vmatprep.subr.mxu0 0.0
  %988 = vmatpush1.msra.mxu0 0.0
  %989 = vmatprep.subr.mxu0 0.0
  %990 = vmatpush1.msra.mxu0 0.0
  %991 = vmatprep.subr.mxu0 0.0
  %992 = vmatpush1.msra.mxu0 0.0
  %993 = vmatprep.subr.mxu0 0.0
  %994 = vmatpush1.msra.mxu0 0.0
  %995 = vmatprep.subr.mxu0 0.0
  %996 = vmatpush1.msra.mxu0 0.0
  %997 = vmatprep.subr.mxu0 0.0
  %998 = vmatpush1.msra.mxu0 0.0
  %999 = vmatprep.subr.mxu0 0.0
  %1000 = vmatpush1.msra.mxu0 0.0
  %1001 = vmatprep.subr.mxu0 0.0
  %1002 = vmatpush1.msra.mxu0 0.0
  %1003 = vmatprep.subr.mxu0 0.0
  %1004 = vmatpush1.msra.mxu0 0.0
  %1005 = vmatprep.subr.mxu0 0.0
  %1006 = vmatpush1.msra.mxu0 0.0
  %1007 = vmatprep.mubr.f32.mxu0 0.0
  %1008 = vmatmul.mubr.f32.gmra.mrb[0].mxu0 %v941
  %v1009 = vpop.f32.mrb[0].mxu0
  %v1010 = vadd.f32 %v938, %v1009
  %v1011 = vpop.f32.mrb[0].mxu0
  %1012 = vdwg.mxu0
  %1013 = vst.msk [vmem:[%s1] sm:$0xff] %vm927, %v1010
  // Predicated region
  $region6: #{decoder_forward.1} parent=0 // pred_check
    _
  $region7: #{decoder_forward.1} parent=0 // pred_check_branch
    %1015 = sbr.rel (0) target = $region9
  $region8: #{decoder_forward.1} parent=0 // pred_region
    _
  $region9: #{decoder_forward.1} parent=0 // pred_fallthru
    _
  // Predicated region
  $region10: #{decoder_forward.1} parent=0 // pred_check
    _
  $region11: #{decoder_forward.1} parent=0 // pred_check_branch
    %1017 = sbr.rel (0) target = $region13
  $region12: #{decoder_forward.1} parent=0 // pred_region
    _
  $region13: #{decoder_forward.1} parent=0 // pred_fallthru
    _

</llo_original>
